<compile_context>
chip_gen: v7x
topology: tpu7x:2x2x1
jax: 0.10.0
libtpu: 0.0.40
codegen_flags: <defaults>
</compile_context>

<pallas_src>
import jax
import jax.numpy as jnp
from jax.experimental import pallas as pl
from jax.experimental.pallas import tpu as pltpu


def _dlinear_kernel(x_ref, m_ref, xori_ref, ind_ref, w_ref, b_ref,
                    imp_ref, sse_ref, cnt_ref):
    x = x_ref[...]                                        # (T, TN) float32

    # Fused DLinear: decomposition + both projections folded into W_eff.
    out = jnp.dot(w_ref[...], x,
                  preferred_element_type=jnp.float32) + b_ref[...]

    # imputation: masks * X + (1 - masks) * output
    m = m_ref[...]
    imp_ref[...] = (m * x + (1.0 - m) * out).astype(imp_ref.dtype)

    # masked-MSE partial sums for this lane tile (reduced in the wrapper)
    ind = ind_ref[...]
    diff = out - xori_ref[...]
    sse_ref[...] = jnp.broadcast_to(jnp.sum(ind * diff * diff), (1, 1, 1))
    cnt_ref[...] = jnp.broadcast_to(jnp.sum(ind), (1, 1, 1))


def _moving_avg_matrix(n_steps: int, window: int) -> jnp.ndarray:
    """A[t', t] s.t. (A @ x)[t'] == edge-replicated AvgPool1d(window, stride=1)."""
    pad = (window - 1) // 2
    idx = jnp.clip(
        jnp.arange(n_steps)[:, None] - pad + jnp.arange(window)[None, :],
        0, n_steps - 1)                                   # (T, window)
    A = jnp.zeros((n_steps, n_steps), jnp.float32)
    A = A.at[jnp.arange(n_steps)[:, None], idx].add(1.0 / window)
    return A


def _lane_tiling(n: int, t_steps: int) -> tuple[int, int]:
    """Pick a lane tile TN (multiple of 128) so all double-buffered slabs fit
    comfortably in VMEM, and the padded lane count Np (multiple of TN)."""
    budget_bytes = 8 * 1024 * 1024                 # conservative VMEM budget
    per_lane_bytes = 5 * 2 * t_steps * 4           # 5 slabs x 2 buffers x T x f32
    max_tn = max(128, (budget_bytes // per_lane_bytes) // 128 * 128)
    tn = min(max_tn, ((n + 127) // 128) * 128)
    n_padded = ((n + tn - 1) // tn) * tn
    return tn, n_padded


def dlinear_forward(X, masks, X_ori, ind_mask,
                    w_seasonal, b_seasonal, w_trend, b_trend,
                    moving_avg_window_size: int):
    B, T, F = X.shape
    N = B * F
    TN, Np = _lane_tiling(N, T)
    G = Np // TN

    # Algebraic fusion: out = W_eff @ x + b_eff.
    A = _moving_avg_matrix(T, moving_avg_window_size)
    w_eff = (w_seasonal + jnp.dot(w_trend - w_seasonal, A)).astype(jnp.float32)
    b_eff = (b_seasonal + b_trend).astype(jnp.float32).reshape(T, 1)

    def to_slab(a, pad_value):
        # (B, T, F) -> lane-dense (T, B*F), padded to Np lanes.
        s = jnp.transpose(a.astype(jnp.float32), (1, 0, 2)).reshape(T, N)
        if Np != N:
            s = jnp.pad(s, ((0, 0), (0, Np - N)), constant_values=pad_value)
        return s

    x_s = to_slab(X, 0.0)
    m_s = to_slab(masks, 1.0)        # padded columns "fully observed"
    xo_s = to_slab(X_ori, 0.0)
    ind_s = to_slab(ind_mask, 0.0)   # padded columns contribute nothing to loss

    lane_spec = pl.BlockSpec((T, TN), lambda j: (0, j))
    part_spec = pl.BlockSpec((1, 1, 1), lambda j: (j, 0, 0))

    imp_s, sse, cnt = pl.pallas_call(
        _dlinear_kernel,
        out_shape=(
            jax.ShapeDtypeStruct((T, Np), X.dtype),
            jax.ShapeDtypeStruct((G, 1, 1), jnp.float32),
            jax.ShapeDtypeStruct((G, 1, 1), jnp.float32),
        ),
        grid_spec=pltpu.PrefetchScalarGridSpec(
            num_scalar_prefetch=0,
            grid=(G,),
            in_specs=[
                lane_spec,                                 # X slab
                lane_spec,                                 # missing_mask slab
                lane_spec,                                 # X_ori slab
                lane_spec,                                 # indicating_mask slab
                pl.BlockSpec((T, T), lambda j: (0, 0)),    # W_eff (constant)
                pl.BlockSpec((T, 1), lambda j: (0, 0)),    # b_eff (constant)
            ],
            out_specs=[
                lane_spec,                                 # imputed slab
                part_spec,                                 # per-block sum sq err
                part_spec,                                 # per-block mask count
            ],
        ),
        compiler_params=pltpu.CompilerParams(
            dimension_semantics=("parallel",)),
    )(x_s, m_s, xo_s, ind_s, w_eff, b_eff)

    imputed = jnp.transpose(imp_s[:, :N].reshape(T, B, F), (1, 0, 2))
    loss = jnp.sum(sse) / (jnp.sum(cnt) + 1e-12)
    return {"imputed_data": imputed.astype(X.dtype), "loss": loss}


def _reference(X, masks, X_ori, ind_mask, w_s, b_s, w_t, b_t, window):
    """Pure-JAX replica of the PyTorch forward for verification."""
    B, T, F = X.shape
    pad = (window - 1) // 2
    front = jnp.repeat(X[:, :1, :], pad, axis=1)
    end = jnp.repeat(X[:, -1:, :], pad, axis=1)
    xp = jnp.concatenate([front, X, end], axis=1)          # (B, T+2p, F)
    trend = jnp.stack([xp[:, i:i + T, :] for i in range(window)], 0).mean(0)
    seasonal = X - trend
    s_in = jnp.transpose(seasonal, (0, 2, 1))               # (B, F, T)
    t_in = jnp.transpose(trend, (0, 2, 1))
    out = (s_in @ w_s.T + b_s) + (t_in @ w_t.T + b_t)       # (B, F, T)
    out = jnp.transpose(out, (0, 2, 1))                     # (B, T, F)
    imputed = masks * X + (1 - masks) * out
    loss = jnp.sum(ind_mask * (out - X_ori) ** 2) / (jnp.sum(ind_mask) + 1e-12)
    return imputed, loss


if __name__ == "__main__":
    n_steps, n_features, batch = 8, 16, 2
    moving_avg_window_size = 5

    key = jax.random.PRNGKey(0)
    k1, k2, k3, k4, k5 = jax.random.split(key, 5)

    X = jax.random.normal(k1, (batch, n_steps, n_features), jnp.float32)
    X_ori = jax.random.normal(k2, (batch, n_steps, n_features), jnp.float32)
    masks = (jax.random.uniform(k3, (batch, n_steps, n_features)) > 0.3).astype(jnp.float32)
    ind_mask = (jax.random.uniform(k4, (batch, n_steps, n_features)) > 0.5).astype(jnp.float32)

    # Parameters: weights = 1/n_steps * ones (per module __init__),
    # biases initialized deterministically (PyTorch default would be uniform).
    w_seasonal = jnp.full((n_steps, n_steps), 1.0 / n_steps, jnp.float32)
    w_trend = jnp.full((n_steps, n_steps), 1.0 / n_steps, jnp.float32)
    bound = 1.0 / (n_steps ** 0.5)
    b_seasonal = jax.random.uniform(k5, (n_steps,), jnp.float32, -bound, bound)
    b_trend = jax.random.uniform(jax.random.fold_in(k5, 1), (n_steps,),
                                 jnp.float32, -bound, bound)

    results = dlinear_forward(X, masks, X_ori, ind_mask,
                              w_seasonal, b_seasonal, w_trend, b_trend,
                              moving_avg_window_size)
    jax.block_until_ready(results["imputed_data"])
    jax.block_until_ready(results["loss"])

    ref_imp, ref_loss = _reference(X, masks, X_ori, ind_mask,
                                   w_seasonal, b_seasonal, w_trend, b_trend,
                                   moving_avg_window_size)
    assert jnp.allclose(results["imputed_data"], ref_imp, atol=1e-5), "imputed mismatch"
    assert jnp.allclose(results["loss"], ref_loss, atol=1e-5), "loss mismatch"

    print("KERNEL_OK")
</pallas_src>

<mosaic_0001>
module attributes {stable_mosaic.version = 11 : i64} {
  func.func @_dlinear_kernel(%arg0: i32, %arg1: memref<8x128xf32, #tpu.memory_space<vmem>>, %arg2: memref<8x128xf32, #tpu.memory_space<vmem>>, %arg3: memref<8x128xf32, #tpu.memory_space<vmem>>, %arg4: memref<8x128xf32, #tpu.memory_space<vmem>>, %arg5: memref<8x8xf32, #tpu.memory_space<vmem>>, %arg6: memref<8x1xf32, #tpu.memory_space<vmem>>, %arg7: memref<8x128xf32, #tpu.memory_space<vmem>>, %arg8: memref<1x1x1xf32, #tpu.memory_space<vmem>>, %arg9: memref<1x1x1xf32, #tpu.memory_space<vmem>>) attributes {dimension_semantics = [#tpu.dimension_semantics<parallel>], iteration_bounds = array<i64: 1>, scalar_prefetch = 0 : i64, scratch_operands = 0 : i64, tpu.core_type = #tpu.core_type<tc>, window_params = [{transform_indices = @transform_0, window_bounds = array<i64: 8, 128>}, {transform_indices = @transform_1, window_bounds = array<i64: 8, 128>}, {transform_indices = @transform_2, window_bounds = array<i64: 8, 128>}, {transform_indices = @transform_3, window_bounds = array<i64: 8, 128>}, {pipeline_mode = #tpu.pipeline_mode<synchronous>, transform_indices = @transform_4, window_bounds = array<i64: 8, 8>}, {pipeline_mode = #tpu.pipeline_mode<synchronous>, transform_indices = @transform_5, window_bounds = array<i64: 8, 1>}, {transform_indices = @transform_6, window_bounds = array<i64: 8, 128>}, {transform_indices = @transform_7, window_bounds = array<i64: 1, 1, 1>}, {transform_indices = @transform_8, window_bounds = array<i64: 1, 1, 1>}]} {
    %c0 = arith.constant 0 : index
    %c0_0 = arith.constant 0 : index
    %0 = vector.load %arg1[%c0, %c0_0] : memref<8x128xf32, #tpu.memory_space<vmem>>, vector<8x128xf32>
    %c0_1 = arith.constant 0 : index
    %c0_2 = arith.constant 0 : index
    %1 = vector.load %arg5[%c0_1, %c0_2] : memref<8x8xf32, #tpu.memory_space<vmem>>, vector<8x8xf32>
    %cst = arith.constant dense<0.000000e+00> : vector<8x128xf32>
    %2 = tpu.matmul %1, %0, %cst {dimension_numbers = #tpu.dot_dimension_numbers<[1], [0], [0], [1], [0, 0, 1, 1], [], []>} : vector<8x8xf32>, vector<8x128xf32>, vector<8x128xf32> -> vector<8x128xf32>
    %c0_3 = arith.constant 0 : index
    %c0_4 = arith.constant 0 : index
    %3 = vector.load %arg6[%c0_3, %c0_4] : memref<8x1xf32, #tpu.memory_space<vmem>>, vector<8x1xf32>
    %4 = vector.broadcast %3 : vector<8x1xf32> to vector<8x128xf32>
    %5 = arith.addf %2, %4 : vector<8x128xf32>
    %c0_5 = arith.constant 0 : index
    %c0_6 = arith.constant 0 : index
    %6 = vector.load %arg2[%c0_5, %c0_6] : memref<8x128xf32, #tpu.memory_space<vmem>>, vector<8x128xf32>
    %7 = arith.mulf %6, %0 : vector<8x128xf32>
    %cst_7 = arith.constant 1.000000e+00 : f32
    %8 = vector.broadcast %cst_7 : f32 to vector<8x128xf32>
    %9 = arith.subf %8, %6 : vector<8x128xf32>
    %10 = arith.mulf %9, %5 : vector<8x128xf32>
    %11 = arith.addf %7, %10 : vector<8x128xf32>
    %c0_8 = arith.constant 0 : index
    %c0_9 = arith.constant 0 : index
    %12 = vector.load %arg7[%c0_8, %c0_9] : memref<8x128xf32, #tpu.memory_space<vmem>>, vector<8x128xf32>
    tpu.vector_store %arg7[%c0_8, %c0_9], %11 {strides = array<i32>} : memref<8x128xf32, #tpu.memory_space<vmem>>, vector<8x128xf32>,
    %c0_10 = arith.constant 0 : index
    %c0_11 = arith.constant 0 : index
    %13 = vector.load %arg4[%c0_10, %c0_11] : memref<8x128xf32, #tpu.memory_space<vmem>>, vector<8x128xf32>
    %c0_12 = arith.constant 0 : index
    %c0_13 = arith.constant 0 : index
    %14 = vector.load %arg3[%c0_12, %c0_13] : memref<8x128xf32, #tpu.memory_space<vmem>>, vector<8x128xf32>
    %15 = arith.subf %5, %14 : vector<8x128xf32>
    %16 = arith.mulf %13, %15 : vector<8x128xf32>
    %17 = arith.mulf %16, %15 : vector<8x128xf32>
    %18 = vector.shape_cast %17 : vector<8x128xf32> to vector<1x8x128xf32>
    %cst_14 = arith.constant dense<0.000000e+00> : vector<1xf32>
    %19 = vector.multi_reduction <add>, %18, %cst_14 [1, 2] : vector<1x8x128xf32> to vector<1xf32>
    %20 = vector.shape_cast %19 : vector<1xf32> to vector<1x1x1xf32>
    %21 = vector.extract %20[0, 0, 0] : f32 from vector<1x1x1xf32>
    %22 = vector.broadcast %21 : f32 to vector<1x1x1xf32>
    %c0_15 = arith.constant 0 : index
    %c0_16 = arith.constant 0 : index
    %c0_17 = arith.constant 0 : index
    %23 = vector.load %arg8[%c0_15, %c0_16, %c0_17] : memref<1x1x1xf32, #tpu.memory_space<vmem>>, vector<1x1x1xf32>
    tpu.vector_store %arg8[%c0_15, %c0_16, %c0_17], %22 {strides = array<i32>} : memref<1x1x1xf32, #tpu.memory_space<vmem>>, vector<1x1x1xf32>,
    %24 = vector.shape_cast %13 : vector<8x128xf32> to vector<1x8x128xf32>
    %cst_18 = arith.constant dense<0.000000e+00> : vector<1xf32>
    %25 = vector.multi_reduction <add>, %24, %cst_18 [1, 2] : vector<1x8x128xf32> to vector<1xf32>
    %26 = vector.shape_cast %25 : vector<1xf32> to vector<1x1x1xf32>
    %27 = vector.extract %26[0, 0, 0] : f32 from vector<1x1x1xf32>
    %28 = vector.broadcast %27 : f32 to vector<1x1x1xf32>
    %c0_19 = arith.constant 0 : index
    %c0_20 = arith.constant 0 : index
    %c0_21 = arith.constant 0 : index
    %29 = vector.load %arg9[%c0_19, %c0_20, %c0_21] : memref<1x1x1xf32, #tpu.memory_space<vmem>>, vector<1x1x1xf32>
    tpu.vector_store %arg9[%c0_19, %c0_20, %c0_21], %28 {strides = array<i32>} : memref<1x1x1xf32, #tpu.memory_space<vmem>>, vector<1x1x1xf32>,
    return
  }
  func.func @transform_0(%arg0: i32) -> (i32, i32) {
    %c0_i32 = arith.constant 0 : i32
    %c0_i32_0 = arith.constant 0 : i32
    return %c0_i32, %arg0 : i32, i32
  }
  func.func @transform_1(%arg0: i32) -> (i32, i32) {
    %c0_i32 = arith.constant 0 : i32
    %c0_i32_0 = arith.constant 0 : i32
    return %c0_i32, %arg0 : i32, i32
  }
  func.func @transform_2(%arg0: i32) -> (i32, i32) {
    %c0_i32 = arith.constant 0 : i32
    %c0_i32_0 = arith.constant 0 : i32
    return %c0_i32, %arg0 : i32, i32
  }
  func.func @transform_3(%arg0: i32) -> (i32, i32) {
    %c0_i32 = arith.constant 0 : i32
    %c0_i32_0 = arith.constant 0 : i32
    return %c0_i32, %arg0 : i32, i32
  }
  func.func @transform_4(%arg0: i32) -> (i32, i32) {
    %c0_i32 = arith.constant 0 : i32
    %c0_i32_0 = arith.constant 0 : i32
    %c0_i32_1 = arith.constant 0 : i32
    return %c0_i32, %c0_i32_0 : i32, i32
  }
  func.func @transform_5(%arg0: i32) -> (i32, i32) {
    %c0_i32 = arith.constant 0 : i32
    %c0_i32_0 = arith.constant 0 : i32
    %c0_i32_1 = arith.constant 0 : i32
    return %c0_i32, %c0_i32_0 : i32, i32
  }
  func.func @transform_6(%arg0: i32) -> (i32, i32) {
    %c0_i32 = arith.constant 0 : i32
    %c0_i32_0 = arith.constant 0 : i32
    return %c0_i32, %arg0 : i32, i32
  }
  func.func @transform_7(%arg0: i32) -> (i32, i32, i32) {
    %c0_i32 = arith.constant 0 : i32
    %c0_i32_0 = arith.constant 0 : i32
    %c0_i32_1 = arith.constant 0 : i32
    return %arg0, %c0_i32, %c0_i32_0 : i32, i32, i32
  }
  func.func @transform_8(%arg0: i32) -> (i32, i32, i32) {
    %c0_i32 = arith.constant 0 : i32
    %c0_i32_0 = arith.constant 0 : i32
    %c0_i32_1 = arith.constant 0 : i32
    return %arg0, %c0_i32, %c0_i32_0 : i32, i32, i32
  }
}

</mosaic_0001>

<llo_original>
// kernel: tpu_custom_call.1
$region0: #{tpu_custom_call.1}
  #allocation0 [shape = 'u32[]', space=smem, size = 0x4, offset = 0x4, fixed_abs, tag = 'smem constant byte address 0x4 - core index']
  #allocation1 [shape = 'u32[144,128]{1,0:T(1,128)}', space=vmem, size = 0x12000, scoped, tag = 'internal scratch']
  %s0 = inlined_call_operand.vmem [shape: f32[8,128], index: 0, kind: input, shape index: {}]
  %s1 = inlined_call_operand.hbm [shape: f32[8,128], index: 1, kind: input, shape index: {}]
  %s2 = inlined_call_operand.vmem [shape: f32[8,128], index: 2, kind: input, shape index: {}]
  %s3 = inlined_call_operand.hbm [shape: f32[8,128], index: 3, kind: input, shape index: {}]
  %s4 = inlined_call_operand.vmem [shape: f32[8,8], index: 4, kind: input, shape index: {}]
  %s5 = inlined_call_operand.vmem [shape: f32[8,1], index: 5, kind: input, shape index: {}]
  %s6 = inlined_call_operand.hbm [shape: f32[8,128], index: 6, kind: output, shape index: {0}]
  %s7 = inlined_call_operand.hbm [shape: f32[1,1,1], index: 7, kind: output, shape index: {1}]
  %s8 = inlined_call_operand.hbm [shape: f32[1,1,1], index: 8, kind: output, shape index: {2}]
  %9 = xla_tuple %s6, %s7, %s8
  %s10 = sld [smem:[#allocation0]]
  $region58: #{tpu_custom_call.1} parent=0
    _
  %s12 = ssub.s32 1, %s10
  %s13 = scalar_select 0, %s12, %s10
  $region1: #{tpu_custom_call.1} parent=0
    #allocation2 [shape = 'u8[4096]{0}', space=vmem, size = 0x1000, scoped, tag = 'input window, operand 1, single buffered']
    #allocation3 [shape = 's32[1]{0}', space=sflag, size = 0x4, scoped, tag = 'scoped memory for tpu_custom_call.1']
    #allocation4 [shape = 's32[1]{0}', space=sflag, size = 0x4, scoped, tag = 'scoped memory for tpu_custom_call.1']
    #allocation5 [shape = 'u8[4096]{0}', space=vmem, size = 0x1000, scoped, tag = 'input window, operand 3, single buffered']
    #allocation6 [shape = 's32[1]{0}', space=sflag, size = 0x4, scoped, tag = 'scoped memory for tpu_custom_call.1']
    #allocation7 [shape = 'u8[4096]{0}', space=vmem, size = 0x1000, scoped, tag = 'output window, operand 0, single buffered']
    #allocation8 [shape = 'u8[512]{0}', space=vmem, size = 0x400, scoped, tag = 'output window, operand 1, single buffered']
    #allocation9 [shape = 's32[1]{0}', space=sflag, size = 0x4, scoped, tag = 'scoped memory for tpu_custom_call.1']
    #allocation10 [shape = 'u8[512]{0}', space=vmem, size = 0x400, scoped, tag = 'output window, operand 2, single buffered']
    %14 = vsyncpa [#allocation3], 0
    %15 = vsyncpa [#allocation6], 0
    %16 = vsyncpa [#allocation4], 0
    %17 = vsyncpa [#allocation9], 0
    // Predicated region
    $region2: #{tpu_custom_call.1} parent=1 // pred_check
      _
    $region3: #{tpu_custom_call.1} parent=1 // pred_check_branch
      %19 = sbr.rel (0) target = $region5
    $region4: #{tpu_custom_call.1} parent=1 // pred_region
      _
    $region5: #{tpu_custom_call.1} parent=1 // pred_fallthru
      _
    // Predicated region
    $region6: #{tpu_custom_call.1} parent=1 // pred_check
      _
    $region7: #{tpu_custom_call.1} parent=1 // pred_check_branch
      %21 = sbr.rel (0) target = $region9
    $region8: #{tpu_custom_call.1} parent=1 // pred_region
      %s23 = ssub.s32 128, 128
      %24 = vsyncadd [#allocation3], %s23
      %s26 = sshll.u32 [#allocation2], 4
      %s27 = int_to_ptr.vmem [resolvable:$true] %s26
      %29 = dma.hbm_to_vmem [thread:$0]  %s1, 128, %s27, [#allocation3]
    $region9: #{tpu_custom_call.1} parent=1 // pred_fallthru
      _
    // Predicated region
    $region10: #{tpu_custom_call.1} parent=1 // pred_check
      _
    $region11: #{tpu_custom_call.1} parent=1 // pred_check_branch
      %31 = sbr.rel (0) target = $region13
    $region12: #{tpu_custom_call.1} parent=1 // pred_region
      _
    $region13: #{tpu_custom_call.1} parent=1 // pred_fallthru
      _
    // Predicated region
    $region14: #{tpu_custom_call.1} parent=1 // pred_check
      _
    $region15: #{tpu_custom_call.1} parent=1 // pred_check_branch
      %33 = sbr.rel (0) target = $region17
    $region16: #{tpu_custom_call.1} parent=1 // pred_region
      %s35 = ssub.s32 128, 128
      %36 = vsyncadd [#allocation6], %s35
      %s38 = sshll.u32 [#allocation5], 4
      %s39 = int_to_ptr.vmem [resolvable:$true] %s38
      %41 = dma.hbm_to_vmem [thread:$0]  %s3, 128, %s39, [#allocation6]
    $region17: #{tpu_custom_call.1} parent=1 // pred_fallthru
      _
    // Predicated region
    $region18: #{tpu_custom_call.1} parent=1 // pred_check
      _
    $region19: #{tpu_custom_call.1} parent=1 // pred_check_branch
      %43 = sbr.rel (0) target = $region21
    $region20: #{tpu_custom_call.1} parent=1 // pred_region
      _
    $region21: #{tpu_custom_call.1} parent=1 // pred_fallthru
      _
    // Predicated region
    $region22: #{tpu_custom_call.1} parent=1 // pred_check
      _
    $region23: #{tpu_custom_call.1} parent=1 // pred_check_branch
      %45 = sbr.rel (0) target = $region25
    $region24: #{tpu_custom_call.1} parent=1 // pred_region
      _
    $region25: #{tpu_custom_call.1} parent=1 // pred_fallthru
      _
    // Predicated region
    $region26: #{tpu_custom_call.1} parent=1 // pred_check
      _
    $region27: #{tpu_custom_call.1} parent=1 // pred_check_branch
      %47 = sbr.rel (0) target = $region29
    $region28: #{tpu_custom_call.1} parent=1 // pred_region
      %48 = dma.done [#allocation3], 128
    $region29: #{tpu_custom_call.1} parent=1 // pred_fallthru
      _
    // Predicated region
    $region30: #{tpu_custom_call.1} parent=1 // pred_check
      _
    $region31: #{tpu_custom_call.1} parent=1 // pred_check_branch
      %50 = sbr.rel (0) target = $region33
    $region32: #{tpu_custom_call.1} parent=1 // pred_region
      %51 = dma.done [#allocation6], 128
    $region33: #{tpu_custom_call.1} parent=1 // pred_fallthru
      _
    %v52 = vld [vmem:[%s0] sm:$0xff]
    %v53 = vld [vmem:[%s4] sm:$0xff]
    %v54 = vld [vmem:[%s5] sm:$0xff]
    %56 = vset.pattern.permute.xlu0 0
    %57 = vperm.xlu0 %56, %v54
    %v58 = vpop.permute.xlu0 %57
    %vm60 = vcmask 64512
    %v62 = vsel %vm60, %v53, 0
    %64 = vmatprep.subr.mxu0 0.0
    %65 = vmatpush1.msra.mxu0 %v52
    %66 = vmatprep.subr.mxu0 0.0
    %67 = vmatpush1.msra.mxu0 0.0
    %68 = vmatprep.subr.mxu0 0.0
    %69 = vmatpush1.msra.mxu0 0.0
    %70 = vmatprep.subr.mxu0 0.0
    %71 = vmatpush1.msra.mxu0 0.0
    %72 = vmatprep.subr.mxu0 0.0
    %73 = vmatpush1.msra.mxu0 0.0
    %74 = vmatprep.subr.mxu0 0.0
    %75 = vmatpush1.msra.mxu0 0.0
    %76 = vmatprep.subr.mxu0 0.0
    %77 = vmatpush1.msra.mxu0 0.0
    %78 = vmatprep.subr.mxu0 0.0
    %79 = vmatpush1.msra.mxu0 0.0
    %80 = vmatprep.subr.mxu0 0.0
    %81 = vmatpush1.msra.mxu0 0.0
    %82 = vmatprep.subr.mxu0 0.0
    %83 = vmatpush1.msra.mxu0 0.0
    %84 = vmatprep.subr.mxu0 0.0
    %85 = vmatpush1.msra.mxu0 0.0
    %86 = vmatprep.subr.mxu0 0.0
    %87 = vmatpush1.msra.mxu0 0.0
    %88 = vmatprep.subr.mxu0 0.0
    %89 = vmatpush1.msra.mxu0 0.0
    %90 = vmatprep.subr.mxu0 0.0
    %91 = vmatpush1.msra.mxu0 0.0
    %92 = vmatprep.subr.mxu0 0.0
    %93 = vmatpush1.msra.mxu0 0.0
    %94 = vmatprep.subr.mxu0 0.0
    %95 = vmatpush1.msra.mxu0 0.0
    %96 = vmatprep.subr.mxu0 0.0
    %97 = vmatpush1.msra.mxu0 0.0
    %98 = vmatprep.subr.mxu0 0.0
    %99 = vmatpush1.msra.mxu0 0.0
    %100 = vmatprep.subr.mxu0 0.0
    %101 = vmatpush1.msra.mxu0 0.0
    %102 = vmatprep.subr.mxu0 0.0
    %103 = vmatpush1.msra.mxu0 0.0
    %104 = vmatprep.subr.mxu0 0.0
    %105 = vmatpush1.msra.mxu0 0.0
    %106 = vmatprep.subr.mxu0 0.0
    %107 = vmatpush1.msra.mxu0 0.0
    %108 = vmatprep.subr.mxu0 0.0
    %109 = vmatpush1.msra.mxu0 0.0
    %110 = vmatprep.subr.mxu0 0.0
    %111 = vmatpush1.msra.mxu0 0.0
    %112 = vmatprep.subr.mxu0 0.0
    %113 = vmatpush1.msra.mxu0 0.0
    %114 = vmatprep.subr.mxu0 0.0
    %115 = vmatpush1.msra.mxu0 0.0
    %116 = vmatprep.subr.mxu0 0.0
    %117 = vmatpush1.msra.mxu0 0.0
    %118 = vmatprep.subr.mxu0 0.0
    %119 = vmatpush1.msra.mxu0 0.0
    %120 = vmatprep.subr.mxu0 0.0
    %121 = vmatpush1.msra.mxu0 0.0
    %122 = vmatprep.subr.mxu0 0.0
    %123 = vmatpush1.msra.mxu0 0.0
    %124 = vmatprep.subr.mxu0 0.0
    %125 = vmatpush1.msra.mxu0 0.0
    %126 = vmatprep.subr.mxu0 0.0
    %127 = vmatpush1.msra.mxu0 0.0
    %128 = vmatprep.mubr.f32.mxu0 0.0
    %129 = vmatmul.mubr.f32.gmra.mrb[0].mxu0 %v62
    %v130 = vpop.f32.mrb[0].mxu0
    %v131 = vadd.f32 %v58, %v130
    %v132 = vpop.f32.mrb[0].mxu0
    %133 = vdwg.mxu0
    %v134 = vld [vmem:[#allocation2] sm:$0xff]
    %v135 = vmul.f32 %v134, %v52
    %v136 = vsub.f32 1.0, %v134
    %v137 = vmul.f32 %v136, %v131
    %v138 = vadd.f32 %v135, %v137
    %139 = vst [vmem:[#allocation7] sm:$0xff] %v138
    %v140 = vld [vmem:[#allocation5] sm:$0xff]
    %v141 = vld [vmem:[%s2] sm:$0xff]
    %v142 = vsub.f32 %v131, %v141
    %v143 = vmul.f32 %v140, %v142
    %v144 = vmul.f32 %v143, %v142
    %145 = vadd.xlane.f32.xlu0 %v144
    %v146 = vpop.xlane.xlu0 %145
    %v147 = vrot.slane %v146, 4
    %v148 = vadd.f32 %v146, %v147
    %v149 = vrot.slane %v148, 2
    %v150 = vadd.f32 %v148, %v149
    %v151 = vrot.slane %v150, 1
    %v152 = vadd.f32 %v150, %v151
    %s153 = vtos %v152
    %v154 = vstv %s153
    %vm155 = vcmask 0
    %156 = vst.msk [vmem:[#allocation8] sm:$0x1] %vm155, %v154
    %157 = vadd.xlane.f32.xlu0 %v140
    %v158 = vpop.xlane.xlu0 %157
    %v159 = vrot.slane %v158, 4
    %v160 = vadd.f32 %v158, %v159
    %v161 = vrot.slane %v160, 2
    %v162 = vadd.f32 %v160, %v161
    %v163 = vrot.slane %v162, 1
    %v164 = vadd.f32 %v162, %v163
    %s165 = vtos %v164
    %v166 = vstv %s165
    %167 = vst.msk [vmem:[#allocation10] sm:$0x1] %vm155, %v166
    // Predicated region
    $region34: #{tpu_custom_call.1} parent=1 // pred_check
      _
    $region35: #{tpu_custom_call.1} parent=1 // pred_check_branch
      %169 = sbr.rel (0) target = $region37
    $region36: #{tpu_custom_call.1} parent=1 // pred_region
      %s171 = ssub.s32 128, 128
      %172 = vsyncadd [#allocation4], %s171
      %s174 = sshll.u32 [#allocation7], 4
      %s175 = int_to_ptr.vmem [resolvable:$true] %s174
      %177 = dma.vmem_to_hbm [thread:$0]  %s175, 128, %s6, [#allocation4]
    $region37: #{tpu_custom_call.1} parent=1 // pred_fallthru
      _
    // Predicated region
    $region38: #{tpu_custom_call.1} parent=1 // pred_check
      _
    $region39: #{tpu_custom_call.1} parent=1 // pred_check_branch
      %179 = sbr.rel (0) target = $region41
    $region40: #{tpu_custom_call.1} parent=1 // pred_region
      %s181 = ssub.s32 16, 16
      %182 = vsyncadd [#allocation9], %s181
      %s184 = sshll.u32 [#allocation8], 4
      %s185 = int_to_ptr.vmem [resolvable:$true] %s184
      %187 = dma.vmem_to_hbm [thread:$0]  %s185, 16, %s7, [#allocation9]
    $region41: #{tpu_custom_call.1} parent=1 // pred_fallthru
      _
    // Predicated region
    $region42: #{tpu_custom_call.1} parent=1 // pred_check
      _
    $region43: #{tpu_custom_call.1} parent=1 // pred_check_branch
      %189 = sbr.rel (0) target = $region45
    $region44: #{tpu_custom_call.1} parent=1 // pred_region
      %s191 = ssub.s32 16, 16
      %192 = vsyncadd [#allocation9], %s191
      %s194 = sshll.u32 [#allocation10], 4
      %s195 = int_to_ptr.vmem [resolvable:$true] %s194
      %197 = dma.vmem_to_hbm [thread:$0]  %s195, 16, %s8, [#allocation9]
    $region45: #{tpu_custom_call.1} parent=1 // pred_fallthru
      _
    // Predicated region
    $region46: #{tpu_custom_call.1} parent=1 // pred_check
      _
    $region47: #{tpu_custom_call.1} parent=1 // pred_check_branch
      %199 = sbr.rel (0) target = $region49
    $region48: #{tpu_custom_call.1} parent=1 // pred_region
      %200 = dma.done [#allocation4], 128
    $region49: #{tpu_custom_call.1} parent=1 // pred_fallthru
      _
    // Predicated region
    $region50: #{tpu_custom_call.1} parent=1 // pred_check
      _
    $region51: #{tpu_custom_call.1} parent=1 // pred_check_branch
      %202 = sbr.rel (0) target = $region53
    $region52: #{tpu_custom_call.1} parent=1 // pred_region
      %203 = dma.done [#allocation9], 16
    $region53: #{tpu_custom_call.1} parent=1 // pred_fallthru
      _
    // Predicated region
    $region54: #{tpu_custom_call.1} parent=1 // pred_check
      _
    $region55: #{tpu_custom_call.1} parent=1 // pred_check_branch
      %205 = sbr.rel (0) target = $region57
    $region56: #{tpu_custom_call.1} parent=1 // pred_region
      %206 = dma.done [#allocation9], 16
    $region57: #{tpu_custom_call.1} parent=1 // pred_fallthru
      _
    %207 = vsyncpa [#allocation3], 1
    %208 = vsyncpa [#allocation6], 1
    %209 = vsyncpa [#allocation4], 1
    %210 = vsyncpa [#allocation9], 1

</llo_original>
